<compile_context>
chip_gen: v6e
topology: v6e:2x2x1
jax: 0.10.0
libtpu: 0.0.40
codegen_flags: <defaults>
</compile_context>

<pallas_src>
import functools

import jax
import jax.numpy as jnp
from jax.experimental import pallas as pl
from jax.experimental.pallas import tpu as pltpu


def _round_up(x, m):
    return ((x + m - 1) // m) * m


# ----------------------------- streamed path (small vocab) -------------------
def _lm_crit_stream_kernel(inp_ref, tgt_ref, mask_ref, loss_ref, msum_ref,
                           loss_acc, msum_acc):
    s = pl.program_id(1)
    nsteps = pl.num_programs(1)

    @pl.when(s == 0)
    def _():
        loss_acc[...] = jnp.zeros_like(loss_acc)
        msum_acc[...] = jnp.zeros_like(msum_acc)

    tile = inp_ref[...].astype(jnp.float32)            # (TR, V)
    tgt = tgt_ref[...]                                 # (TR, 1) int32
    m = mask_ref[...]                                  # (TR, 1) f32

    lane_ids = jax.lax.broadcasted_iota(jnp.int32, tile.shape, 1)
    gathered = jnp.sum(jnp.where(lane_ids == tgt, tile, 0.0),
                       axis=1, keepdims=True)          # (TR, 1)
    # Rows past N (padded / partial edge blocks) may contain garbage; mask==0
    # guards them (jnp.where does not propagate NaN from the unselected branch).
    loss_acc[...] += jnp.where(m != 0.0, -gathered * m, 0.0)
    msum_acc[...] += m

    @pl.when(s == nsteps - 1)
    def _():
        loss_ref[...] = jnp.sum(loss_acc[...]).reshape(1, 1, 1)
        msum_ref[...] = jnp.sum(msum_acc[...]).reshape(1, 1, 1)


# ----------------------------- gather path (large vocab) ---------------------
def _lm_crit_gather_kernel(
    tgt_sm,      # (N_pad,) int32  — scalar-prefetched targets (SMEM)
    inp_hbm,     # (N, V)   native — full log-prob matrix, left in HBM
    tgt_ref,     # (TR, 1)  int32  — VMEM tile of targets (vector lane compare)
    mask_ref,    # (TR, 1)  f32    — VMEM tile of the mask
    loss_ref,    # (1,1,1)  f32    — per-core partial sum(-logprob * mask)
    msum_ref,    # (1,1,1)  f32    — per-core partial sum(mask)
    gbuf,        # VMEM (2, TR, BC) native — double-buffered gathered blocks
    sems,        # DMA semaphores (2,) — one shared semaphore per slot
    loss_acc,    # VMEM (TR, 1) f32
    msum_acc,    # VMEM (TR, 1) f32
    *,
    n_rows, vocab, bc, tile_rows, steps_per_core, unroll,
):
    c = pl.program_id(0)
    s = pl.program_id(1)
    nsteps = pl.num_programs(1)
    slot = s % 2
    pow2 = (vocab % bc == 0) and ((bc & (bc - 1)) == 0)

    def block_start(t):
        # Start column of the bc-wide vocab block holding target t, in-bounds.
        if vocab <= bc:
            return jnp.zeros_like(t)
        if pow2:
            col = t & ~(bc - 1)
        else:
            col = (t // bc) * bc
        col = jnp.clip(col, 0, vocab - bc)   # guard bad targets -> valid DMA
        if pow2:
            col = pl.multiple_of(col, bc)
        return col

    def issue(tile_idx, buf_slot):
        base = tile_idx * tile_rows

        def body(r, carry):
            row = base + r
            row_c = jnp.minimum(row, n_rows - 1)      # clamp padded rows (mask==0)
            col = block_start(tgt_sm[row])
            pltpu.make_async_copy(
                inp_hbm.at[pl.ds(row_c, 1), pl.ds(col, bc)],
                gbuf.at[buf_slot, pl.ds(r, 1)],
                sems.at[buf_slot],
            ).start()
            return carry

        jax.lax.fori_loop(0, tile_rows, body, 0, unroll=unroll)

    def wait_all(buf_slot):
        # DMA semaphores count bytes: one (TR, BC)-sized wait covers all TR
        # row-copies of (1, BC) that signalled this slot's semaphore.
        pltpu.make_async_copy(
            gbuf.at[1 - buf_slot], gbuf.at[buf_slot], sems.at[buf_slot],
        ).wait()

    # First step of this core's sweep: zero accumulators and prime slot 0.
    @pl.when(s == 0)
    def _():
        loss_acc[...] = jnp.zeros_like(loss_acc)
        msum_acc[...] = jnp.zeros_like(msum_acc)
        issue(c * steps_per_core, 0)

    # Prefetch the next tile into the other slot before blocking on this one.
    @pl.when(s + 1 < nsteps)
    def _():
        issue(c * steps_per_core + s + 1, 1 - slot)

    wait_all(slot)

    tile = gbuf[slot].astype(jnp.float32)              # (TR, BC)
    tgt = tgt_ref[...]                                 # (TR, 1)
    m = mask_ref[...]                                  # (TR, 1)

    if vocab <= bc:
        rem = tgt
    elif pow2:
        rem = tgt & (bc - 1)                           # lane offset within block
    else:
        rem = tgt - jnp.clip((tgt // bc) * bc, 0, vocab - bc)

    lane_ids = jax.lax.broadcasted_iota(jnp.int32, tile.shape, 1)
    gathered = jnp.sum(jnp.where(lane_ids == rem, tile, 0.0),
                       axis=1, keepdims=True)          # (TR, 1)

    loss_acc[...] += jnp.where(m != 0.0, -gathered * m, 0.0)
    msum_acc[...] += m

    @pl.when(s == nsteps - 1)
    def _():
        loss_ref[...] = jnp.sum(loss_acc[...]).reshape(1, 1, 1)
        msum_ref[...] = jnp.sum(msum_acc[...]).reshape(1, 1, 1)


# ----------------------------- wrapper ---------------------------------------
def language_model_criterion(inp, target, mask, *, tile_rows=None,
                             lane_block=128, streamed_vocab_max=2048,
                             num_par=2):
    """Masked NLL: sum(-input[b,t,target[b,t]] * mask[b,t]) / sum(mask[b,t])."""
    B, T, V = inp.shape
    # Truncate target/mask to the input seq length (matches PyTorch slicing).
    target = target[:, :T]
    mask = mask[:, :T]
    N = B * T

    inp_flat = inp.reshape(N, V)                       # native dtype, no HBM copy
    tgt_flat = target.reshape(N).astype(jnp.int32)
    mask_flat = mask.reshape(N).astype(jnp.float32)

    streamed = V <= streamed_vocab_max
    tr = tile_rows if tile_rows is not None else (256 if streamed else 128)
    tr = max(16, min(tr, _round_up(N, 16)))            # clamp for tiny inputs

    n_pad = _round_up(N, num_par * tr)
    if n_pad != N:
        pad = n_pad - N
        tgt_flat = jnp.pad(tgt_flat, (0, pad))         # padded rows: target 0
        mask_flat = jnp.pad(mask_flat, (0, pad))       # padded rows: mask 0
    tgt_col = tgt_flat.reshape(n_pad, 1)
    mask_col = mask_flat.reshape(n_pad, 1)
    steps = n_pad // (num_par * tr)

    out_shape = (jax.ShapeDtypeStruct((num_par, 1, 1), jnp.float32),
                 jax.ShapeDtypeStruct((num_par, 1, 1), jnp.float32))

    if streamed:
        n_row_blocks = pl.cdiv(N, tr)                  # valid input row-blocks

        def inp_idx(c, s):
            # Clamp fully-out-of-range (padded) blocks onto a valid block;
            # their mask is zero so they contribute nothing.
            return (jnp.minimum(c * steps + s, n_row_blocks - 1), 0)

        def tm_idx(c, s):
            return (c * steps + s, 0)

        def out_idx(c, s):
            return (c, 0, 0)

        loss_p, msum_p = pl.pallas_call(
            _lm_crit_stream_kernel,
            out_shape=out_shape,
            grid_spec=pltpu.PrefetchScalarGridSpec(
                num_scalar_prefetch=0,
                grid=(num_par, steps),
                in_specs=[
                    pl.BlockSpec((tr, V), inp_idx),
                    pl.BlockSpec((tr, 1), tm_idx),
                    pl.BlockSpec((tr, 1), tm_idx),
                ],
                out_specs=[
                    pl.BlockSpec((1, 1, 1), out_idx),
                    pl.BlockSpec((1, 1, 1), out_idx),
                ],
                scratch_shapes=[
                    pltpu.VMEM((tr, 1), jnp.float32),
                    pltpu.VMEM((tr, 1), jnp.float32),
                ],
            ),
            compiler_params=pltpu.CompilerParams(
                dimension_semantics=("parallel", "arbitrary")),
        )(inp_flat, tgt_col, mask_col)
    else:
        BC = V if V < lane_block else lane_block
        kernel = functools.partial(
            _lm_crit_gather_kernel, n_rows=N, vocab=V, bc=BC,
            tile_rows=tr, steps_per_core=steps, unroll=8)

        def tm_idx(c, s, tgt_sm):
            return (c * steps + s, 0)

        def out_idx(c, s, tgt_sm):
            return (c, 0, 0)

        loss_p, msum_p = pl.pallas_call(
            kernel,
            out_shape=out_shape,
            grid_spec=pltpu.PrefetchScalarGridSpec(
                num_scalar_prefetch=1,                  # targets -> SMEM
                grid=(num_par, steps),
                in_specs=[
                    pl.BlockSpec(memory_space=pl.ANY),  # (N, V) stays in HBM
                    pl.BlockSpec((tr, 1), tm_idx),
                    pl.BlockSpec((tr, 1), tm_idx),
                ],
                out_specs=[
                    pl.BlockSpec((1, 1, 1), out_idx),
                    pl.BlockSpec((1, 1, 1), out_idx),
                ],
                scratch_shapes=[
                    pltpu.VMEM((2, tr, BC), inp_flat.dtype),
                    pltpu.SemaphoreType.DMA((2,)),
                    pltpu.VMEM((tr, 1), jnp.float32),
                    pltpu.VMEM((tr, 1), jnp.float32),
                ],
            ),
            compiler_params=pltpu.CompilerParams(
                dimension_semantics=("parallel", "arbitrary")),
        )(tgt_flat, inp_flat, tgt_col, mask_col)

    # Matches PyTorch behavior: an all-zero mask yields NaN.
    return (jnp.sum(loss_p) / jnp.sum(msum_p)).astype(jnp.float32)


if __name__ == "__main__":
    def reference(inp, target, mask):
        T = inp.shape[1]
        t = target[:, :T].astype(jnp.int32)
        m = mask[:, :T].astype(jnp.float32)
        g = jnp.take_along_axis(inp.astype(jnp.float32), t[..., None], axis=2)[..., 0]
        return jnp.sum(-g * m) / jnp.sum(m)

    def make_case(key, B, T, T_full, V, dtype):
        k1, k2 = jax.random.split(key)
        # "input" plays the role of log-probs from the model.
        logits = jax.random.normal(k1, (B, T, V), dtype=jnp.float32)
        inp = jax.nn.log_softmax(logits, axis=-1).astype(dtype)
        target = jax.random.randint(k2, (B, T_full), 0, V, dtype=jnp.int32)
        lengths = jnp.array([6, 4], dtype=jnp.int32)[:B]
        mask = (jnp.arange(T_full)[None, :] < lengths[:, None]).astype(jnp.float32)
        return inp, target, mask

    key = jax.random.PRNGKey(0)
    keys = jax.random.split(key, 3)

    # (V, dtype): V<=2048 exercises the streamed path (incl. native bf16);
    #             V>2048 exercises the manual-DMA gather path.
    cases = [(512, jnp.float32), (4096, jnp.float32), (1024, jnp.bfloat16)]

    for k, (V, dtype) in zip(keys, cases):
        inp, target, mask = make_case(k, 2, 8, 10, V, dtype)   # T_full>T: truncation
        out = jax.block_until_ready(language_model_criterion(inp, target, mask))
        ref = jax.block_until_ready(reference(inp, target, mask))
        assert jnp.allclose(out, ref, rtol=1e-5, atol=1e-5), (V, dtype, out, ref)

    print("KERNEL_OK")
</pallas_src>

<mosaic_0001>
module attributes {stable_mosaic.version = 11 : i64} {
  func.func @_lm_crit_stream_kernel(%arg0: i32, %arg1: i32, %arg2: memref<16x512xf32, #tpu.memory_space<vmem>>, %arg3: memref<16x1xi32, #tpu.memory_space<vmem>>, %arg4: memref<16x1xf32, #tpu.memory_space<vmem>>, %arg5: memref<1x1x1xf32, #tpu.memory_space<vmem>>, %arg6: memref<1x1x1xf32, #tpu.memory_space<vmem>>, %arg7: memref<16x1xf32, #tpu.memory_space<vmem>>, %arg8: memref<16x1xf32, #tpu.memory_space<vmem>>) attributes {dimension_semantics = [#tpu.dimension_semantics<parallel>, #tpu.dimension_semantics<arbitrary>], iteration_bounds = array<i64: 2, 1>, scalar_prefetch = 0 : i64, scratch_operands = 2 : i64, tpu.core_type = #tpu.core_type<tc>, window_params = [{transform_indices = @transform_0, window_bounds = array<i64: 16, 512>}, {transform_indices = @transform_1, window_bounds = array<i64: 16, 1>}, {transform_indices = @transform_2, window_bounds = array<i64: 16, 1>}, {transform_indices = @transform_3, window_bounds = array<i64: 1, 1, 1>}, {transform_indices = @transform_4, window_bounds = array<i64: 1, 1, 1>}]} {
    %c0_i32 = arith.constant 0 : i32
    %0 = arith.cmpi eq, %arg1, %c0_i32 : i32
    %1 = arith.extui %0 : i1 to i32
    %c0_i32_0 = arith.constant 0 : i32
    %2 = arith.cmpi ne, %1, %c0_i32_0 : i32
    scf.if %2 {
      %cst_20 = arith.constant 0.000000e+00 : f32
      %29 = vector.broadcast %cst_20 : f32 to vector<16x1xf32>
      %c0_21 = arith.constant 0 : index
      %c0_22 = arith.constant 0 : index
      %30 = vector.load %arg7[%c0_21, %c0_22] : memref<16x1xf32, #tpu.memory_space<vmem>>, vector<16x1xf32>
      tpu.vector_store %arg7[%c0_21, %c0_22], %29 {strides = array<i32>} : memref<16x1xf32, #tpu.memory_space<vmem>>, vector<16x1xf32>,
      %cst_23 = arith.constant 0.000000e+00 : f32
      %31 = vector.broadcast %cst_23 : f32 to vector<16x1xf32>
      %c0_24 = arith.constant 0 : index
      %c0_25 = arith.constant 0 : index
      %32 = vector.load %arg8[%c0_24, %c0_25] : memref<16x1xf32, #tpu.memory_space<vmem>>, vector<16x1xf32>
      tpu.vector_store %arg8[%c0_24, %c0_25], %31 {strides = array<i32>} : memref<16x1xf32, #tpu.memory_space<vmem>>, vector<16x1xf32>,
    } else {
    }
    %c0 = arith.constant 0 : index
    %c0_1 = arith.constant 0 : index
    %3 = vector.load %arg2[%c0, %c0_1] : memref<16x512xf32, #tpu.memory_space<vmem>>, vector<16x512xf32>
    %c0_2 = arith.constant 0 : index
    %c0_3 = arith.constant 0 : index
    %4 = vector.load %arg3[%c0_2, %c0_3] : memref<16x1xi32, #tpu.memory_space<vmem>>, vector<16x1xi32>
    %c0_4 = arith.constant 0 : index
    %c0_5 = arith.constant 0 : index
    %5 = vector.load %arg4[%c0_4, %c0_5] : memref<16x1xf32, #tpu.memory_space<vmem>>, vector<16x1xf32>
    %6 = tpu.iota {dimensions = array<i32: 1>} : vector<16x512xi32>
    %7 = vector.broadcast %4 : vector<16x1xi32> to vector<16x512xi32>
    %8 = arith.cmpi eq, %6, %7 : vector<16x512xi32>
    %cst = arith.constant 0.000000e+00 : f32
    %9 = vector.broadcast %cst : f32 to vector<16x512xf32>
    %10 = arith.select %8, %3, %9 : vector<16x512xi1>, vector<16x512xf32>
    %cst_6 = arith.constant dense<0.000000e+00> : vector<16xf32>
    %11 = vector.multi_reduction <add>, %10, %cst_6 [1] : vector<16x512xf32> to vector<16xf32>
    %12 = vector.shape_cast %11 : vector<16xf32> to vector<16x1xf32>
    %c0_7 = arith.constant 0 : index
    %c0_8 = arith.constant 0 : index
    %13 = vector.load %arg7[%c0_7, %c0_8] : memref<16x1xf32, #tpu.memory_space<vmem>>, vector<16x1xf32>
    %cst_9 = arith.constant 0.000000e+00 : f32
    %14 = vector.broadcast %cst_9 : f32 to vector<16x1xf32>
    %15 = arith.cmpf one, %5, %14 : vector<16x1xf32>
    %cst_10 = arith.constant 0.000000e+00 : f32
    %16 = vector.broadcast %cst_10 : f32 to vector<16x1xf32>
    %17 = arith.subf %16, %12 : vector<16x1xf32>
    %18 = arith.mulf %17, %5 : vector<16x1xf32>
    %cst_11 = arith.constant 0.000000e+00 : f32
    %19 = vector.broadcast %cst_11 : f32 to vector<16x1xf32>
    %20 = arith.select %15, %18, %19 : vector<16x1xi1>, vector<16x1xf32>
    %21 = arith.addf %13, %20 : vector<16x1xf32>
    %c0_12 = arith.constant 0 : index
    %c0_13 = arith.constant 0 : index
    %22 = vector.load %arg7[%c0_12, %c0_13] : memref<16x1xf32, #tpu.memory_space<vmem>>, vector<16x1xf32>
    tpu.vector_store %arg7[%c0_12, %c0_13], %21 {strides = array<i32>} : memref<16x1xf32, #tpu.memory_space<vmem>>, vector<16x1xf32>,
    %c0_14 = arith.constant 0 : index
    %c0_15 = arith.constant 0 : index
    %23 = vector.load %arg8[%c0_14, %c0_15] : memref<16x1xf32, #tpu.memory_space<vmem>>, vector<16x1xf32>
    %24 = arith.addf %23, %5 : vector<16x1xf32>
    %c0_16 = arith.constant 0 : index
    %c0_17 = arith.constant 0 : index
    %25 = vector.load %arg8[%c0_16, %c0_17] : memref<16x1xf32, #tpu.memory_space<vmem>>, vector<16x1xf32>
    tpu.vector_store %arg8[%c0_16, %c0_17], %24 {strides = array<i32>} : memref<16x1xf32, #tpu.memory_space<vmem>>, vector<16x1xf32>,
    %c0_i32_18 = arith.constant 0 : i32
    %26 = arith.cmpi eq, %arg1, %c0_i32_18 : i32
    %27 = arith.extui %26 : i1 to i32
    %c0_i32_19 = arith.constant 0 : i32
    %28 = arith.cmpi ne, %27, %c0_i32_19 : i32
    scf.if %28 {
      %c0_20 = arith.constant 0 : index
      %c0_21 = arith.constant 0 : index
      %29 = vector.load %arg7[%c0_20, %c0_21] : memref<16x1xf32, #tpu.memory_space<vmem>>, vector<16x1xf32>
      %30 = vector.shape_cast %29 : vector<16x1xf32> to vector<1x16x1xf32>
      %cst_22 = arith.constant dense<0.000000e+00> : vector<1xf32>
      %31 = vector.multi_reduction <add>, %30, %cst_22 [1, 2] : vector<1x16x1xf32> to vector<1xf32>
      %32 = vector.shape_cast %31 : vector<1xf32> to vector<1x1x1xf32>
      %33 = vector.extract %32[0, 0, 0] : f32 from vector<1x1x1xf32>
      %34 = vector.broadcast %33 : f32 to vector<1x1x1xf32>
      %c0_23 = arith.constant 0 : index
      %c0_24 = arith.constant 0 : index
      %c0_25 = arith.constant 0 : index
      %35 = vector.load %arg5[%c0_23, %c0_24, %c0_25] : memref<1x1x1xf32, #tpu.memory_space<vmem>>, vector<1x1x1xf32>
      tpu.vector_store %arg5[%c0_23, %c0_24, %c0_25], %34 {strides = array<i32>} : memref<1x1x1xf32, #tpu.memory_space<vmem>>, vector<1x1x1xf32>,
      %c0_26 = arith.constant 0 : index
      %c0_27 = arith.constant 0 : index
      %36 = vector.load %arg8[%c0_26, %c0_27] : memref<16x1xf32, #tpu.memory_space<vmem>>, vector<16x1xf32>
      %37 = vector.shape_cast %36 : vector<16x1xf32> to vector<1x16x1xf32>
      %cst_28 = arith.constant dense<0.000000e+00> : vector<1xf32>
      %38 = vector.multi_reduction <add>, %37, %cst_28 [1, 2] : vector<1x16x1xf32> to vector<1xf32>
      %39 = vector.shape_cast %38 : vector<1xf32> to vector<1x1x1xf32>
      %40 = vector.extract %39[0, 0, 0] : f32 from vector<1x1x1xf32>
      %41 = vector.broadcast %40 : f32 to vector<1x1x1xf32>
      %c0_29 = arith.constant 0 : index
      %c0_30 = arith.constant 0 : index
      %c0_31 = arith.constant 0 : index
      %42 = vector.load %arg6[%c0_29, %c0_30, %c0_31] : memref<1x1x1xf32, #tpu.memory_space<vmem>>, vector<1x1x1xf32>
      tpu.vector_store %arg6[%c0_29, %c0_30, %c0_31], %41 {strides = array<i32>} : memref<1x1x1xf32, #tpu.memory_space<vmem>>, vector<1x1x1xf32>,
    } else {
    }
    return
  }
  func.func @transform_0(%arg0: i32, %arg1: i32) -> (i32, i32) {
    %c1_i32 = arith.constant 1 : i32
    %0 = arith.muli %arg0, %c1_i32 : i32
    %1 = arith.addi %0, %arg1 : i32
    %c0_i32 = arith.constant 0 : i32
    %2 = arith.minsi %1, %c0_i32 : i32
    %c0_i32_0 = arith.constant 0 : i32
    %c0_i32_1 = arith.constant 0 : i32
    return %2, %c0_i32_0 : i32, i32
  }
  func.func @transform_1(%arg0: i32, %arg1: i32) -> (i32, i32) {
    %c1_i32 = arith.constant 1 : i32
    %0 = arith.muli %arg0, %c1_i32 : i32
    %1 = arith.addi %0, %arg1 : i32
    %c0_i32 = arith.constant 0 : i32
    %c0_i32_0 = arith.constant 0 : i32
    return %1, %c0_i32 : i32, i32
  }
  func.func @transform_2(%arg0: i32, %arg1: i32) -> (i32, i32) {
    %c1_i32 = arith.constant 1 : i32
    %0 = arith.muli %arg0, %c1_i32 : i32
    %1 = arith.addi %0, %arg1 : i32
    %c0_i32 = arith.constant 0 : i32
    %c0_i32_0 = arith.constant 0 : i32
    return %1, %c0_i32 : i32, i32
  }
  func.func @transform_3(%arg0: i32, %arg1: i32) -> (i32, i32, i32) {
    %c0_i32 = arith.constant 0 : i32
    %c0_i32_0 = arith.constant 0 : i32
    %c0_i32_1 = arith.constant 0 : i32
    return %arg0, %c0_i32, %c0_i32_0 : i32, i32, i32
  }
  func.func @transform_4(%arg0: i32, %arg1: i32) -> (i32, i32, i32) {
    %c0_i32 = arith.constant 0 : i32
    %c0_i32_0 = arith.constant 0 : i32
    %c0_i32_1 = arith.constant 0 : i32
    return %arg0, %c0_i32, %c0_i32_0 : i32, i32, i32
  }
}

</mosaic_0001>

<llo_original>
// kernel: tpu_custom_call.1
$region0: #{tpu_custom_call.1}
  #allocation0 [shape = 'u32[]', space=smem, size = 0x4, offset = 0x4, fixed_abs, tag = 'smem constant byte address 0x4 - core index']
  #allocation1 [shape = 'u32[144,128]{1,0:T(1,128)}', space=vmem, size = 0x12000, scoped, tag = 'internal scratch']
  #allocation2 [shape = 'f32[16,1]{1,0:T(8,128)}', space=vmem, size = 0x2000, scoped, tag = 'scratch operand']
  #allocation3 [shape = 'f32[16,1]{1,0:T(8,128)}', space=vmem, size = 0x2000, scoped, tag = 'scratch operand']
  %s0 = inlined_call_operand.vmem [shape: f32[16,512], index: 0, kind: input, shape index: {}]
  %s1 = inlined_call_operand.vmem [shape: s32[32,1], index: 1, kind: input, shape index: {}]
  %s2 = inlined_call_operand.vmem [shape: f32[32,1], index: 2, kind: input, shape index: {}]
  %s3 = inlined_call_operand.vmem [shape: f32[2,1,1], index: 3, kind: output, shape index: {0}]
  %s4 = inlined_call_operand.vmem [shape: f32[2,1,1], index: 4, kind: output, shape index: {1}]
  %5 = xla_tuple %s3, %s4
  %s6 = sld [smem:[#allocation0]]
  $region61: #{tpu_custom_call.1} parent=0
    _
  %s8 = ssub.s32 1, %s6
  %s9 = scalar_select 0, %s8, %s6
  loop: start=0, step=1, limit=4
  $region2: #{tpu_custom_call.1} parent=0 // loop_pre_header
    _
  $region3: #{tpu_custom_call.1} parent=0 // loop_header
    %s11 = sphi 0, %s15
    %p12 = scmp.ge.s32.totalorder %s11, 4
    %s18 = sphi 0, %s30
    %s19 = sphi 0, %s26
    %s20 = sphi 0, %s18
    %s21 = sphi 0, %s19
    %s22 = sphi 0, %s20
    %s23 = sphi 0, %s21
    %s39 = sphi 0, %s41
    %s42 = sphi 0, %s39
    %s43 = sphi 0, %s42
    %s59 = sphi 0, %s43
    %s67 = sphi 0, %s69
    %s70 = sphi 0, %s67
    %s71 = sphi 0, %s70
    %s87 = sphi 0, %s71
    %s95 = sphi 0, %s97
    %s98 = sphi 0, %s95
    %s99 = sphi 0, %s98
    %s115 = sphi 0, %s99
    %s121 = sphi 0, %s123
    %s124 = sphi 0, %s121
    %s125 = sphi 0, %s124
    %s141 = sphi 0, %s125
    %s147 = sphi 0, %s149
    %s150 = sphi 0, %s147
    %s151 = sphi 0, %s150
    %s167 = sphi 0, %s151
  $region4: #{tpu_custom_call.1} parent=0 // loop_header_branch
    %14 = sbr.rel (%p12) target = $region8
  $region5: #{tpu_custom_call.1} parent=0 // loop_body
    %s16 = ssub.s32 %s11, 1
    %s17 = ssub.s32 %s11, 2
    %s24 = sadd.s32 1, %s19
    %p25 = scmp.ge.s32.totalorder %s24, 1
    %s26 = scalar_select %p25, 0, %s24
    %s27 = sadd.s32 1, %s18
    %s28 = scalar_select %p25, %s27, %s18
    %p29 = scmp.ge.s32.totalorder %s28, 2
    %s30 = scalar_select %p29, 0, %s28
    %s31 = sadd.s32 %s18, %s19
    %p32 = scmp.lt.s32.totalorder %s31, 0
    %s33 = scalar_select %p32, %s31, 0
    %s34 = sadd.s32 %s30, %s26
    %p35 = scmp.lt.s32.totalorder %s34, 0
    %s36 = scalar_select %p35, %s34, 0
    %s37 = ssub.s32 %s33, %s36
    %p38 = scmp.eq.s32.totalorder %s37, 0
    %s40 = sadd.s32 %s39, 1
    %s41 = scalar_select %p38, %s39, %s40
    %p44 = pneg %p38
    %p45 = scmp.eq.s32.totalorder %s11, 1
    %p46 = por %p44, %p45
    %p47 = scmp.ne.s32.totalorder %s39, %s42
    %p48 = scmp.eq.s32.totalorder %s11, 0
    %p49 = por %p47, %p48
    %p50 = scmp.ne.s32.totalorder %s39, %s42
    %p51 = scmp.eq.s32.totalorder %s16, 1
    %p52 = por %p50, %p51
    %p53 = scmp.ne.s32.totalorder %s42, %s43
    %p54 = scmp.eq.s32.totalorder %s16, 0
    %p55 = por %p53, %p54
    %p56 = scmp.ne.s32.totalorder %s42, %s43
    %p57 = scmp.eq.s32.totalorder %s17, 1
    %p58 = por %p56, %p57
    %p60 = scmp.ne.s32.totalorder %s43, %s59
    %p61 = scmp.eq.s32.totalorder %s17, 0
    %p62 = por %p60, %p61
    %s63 = sadd.s32 %s18, %s19
    %s64 = sadd.s32 %s30, %s26
    %s65 = ssub.s32 %s63, %s64
    %p66 = scmp.eq.s32.totalorder %s65, 0
    %s68 = sadd.s32 %s67, 1
    %s69 = scalar_select %p66, %s67, %s68
    %p72 = pneg %p66
    %p73 = scmp.eq.s32.totalorder %s11, 1
    %p74 = por %p72, %p73
    %p75 = scmp.ne.s32.totalorder %s67, %s70
    %p76 = scmp.eq.s32.totalorder %s11, 0
    %p77 = por %p75, %p76
    %p78 = scmp.ne.s32.totalorder %s67, %s70
    %p79 = scmp.eq.s32.totalorder %s16, 1
    %p80 = por %p78, %p79
    %p81 = scmp.ne.s32.totalorder %s70, %s71
    %p82 = scmp.eq.s32.totalorder %s16, 0
    %p83 = por %p81, %p82
    %p84 = scmp.ne.s32.totalorder %s70, %s71
    %p85 = scmp.eq.s32.totalorder %s17, 1
    %p86 = por %p84, %p85
    %p88 = scmp.ne.s32.totalorder %s71, %s87
    %p89 = scmp.eq.s32.totalorder %s17, 0
    %p90 = por %p88, %p89
    %s91 = sadd.s32 %s18, %s19
    %s92 = sadd.s32 %s30, %s26
    %s93 = ssub.s32 %s91, %s92
    %p94 = scmp.eq.s32.totalorder %s93, 0
    %s96 = sadd.s32 %s95, 1
    %s97 = scalar_select %p94, %s95, %s96
    %p100 = pneg %p94
    %p101 = scmp.eq.s32.totalorder %s11, 1
    %p102 = por %p100, %p101
    %p103 = scmp.ne.s32.totalorder %s95, %s98
    %p104 = scmp.eq.s32.totalorder %s11, 0
    %p105 = por %p103, %p104
    %p106 = scmp.ne.s32.totalorder %s95, %s98
    %p107 = scmp.eq.s32.totalorder %s16, 1
    %p108 = por %p106, %p107
    %p109 = scmp.ne.s32.totalorder %s98, %s99
    %p110 = scmp.eq.s32.totalorder %s16, 0
    %p111 = por %p109, %p110
    %p112 = scmp.ne.s32.totalorder %s98, %s99
    %p113 = scmp.eq.s32.totalorder %s17, 1
    %p114 = por %p112, %p113
    %p116 = scmp.ne.s32.totalorder %s99, %s115
    %p117 = scmp.eq.s32.totalorder %s17, 0
    %p118 = por %p116, %p117
    %s119 = ssub.s32 %s18, %s30
    %p120 = scmp.eq.s32.totalorder %s119, 0
    %s122 = sadd.s32 %s121, 1
    %s123 = scalar_select %p120, %s121, %s122
    %p126 = pneg %p120
    %p127 = scmp.eq.s32.totalorder %s11, 1
    %p128 = por %p126, %p127
    %p129 = scmp.ne.s32.totalorder %s121, %s124
    %p130 = scmp.eq.s32.totalorder %s11, 0
    %p131 = por %p129, %p130
    %p132 = scmp.ne.s32.totalorder %s121, %s124
    %p133 = scmp.eq.s32.totalorder %s16, 1
    %p134 = por %p132, %p133
    %p135 = scmp.ne.s32.totalorder %s124, %s125
    %p136 = scmp.eq.s32.totalorder %s16, 0
    %p137 = por %p135, %p136
    %p138 = scmp.ne.s32.totalorder %s124, %s125
    %p139 = scmp.eq.s32.totalorder %s17, 1
    %p140 = por %p138, %p139
    %p142 = scmp.ne.s32.totalorder %s125, %s141
    %p143 = scmp.eq.s32.totalorder %s17, 0
    %p144 = por %p142, %p143
    %s145 = ssub.s32 %s18, %s30
    %p146 = scmp.eq.s32.totalorder %s145, 0
    %s148 = sadd.s32 %s147, 1
    %s149 = scalar_select %p146, %s147, %s148
    %p152 = pneg %p146
    %p153 = scmp.eq.s32.totalorder %s11, 1
    %p154 = por %p152, %p153
    %p155 = scmp.ne.s32.totalorder %s147, %s150
    %p156 = scmp.eq.s32.totalorder %s11, 0
    %p157 = por %p155, %p156
    %p158 = scmp.ne.s32.totalorder %s147, %s150
    %p159 = scmp.eq.s32.totalorder %s16, 1
    %p160 = por %p158, %p159
    %p161 = scmp.ne.s32.totalorder %s150, %s151
    %p162 = scmp.eq.s32.totalorder %s16, 0
    %p163 = por %p161, %p162
    %p164 = scmp.ne.s32.totalorder %s150, %s151
    %p165 = scmp.eq.s32.totalorder %s17, 1
    %p166 = por %p164, %p165
    %p168 = scmp.ne.s32.totalorder %s151, %s167
    %p169 = scmp.eq.s32.totalorder %s17, 0
    %p170 = por %p168, %p169
    %p171 = scmp.le.s32.totalorder 1, %s11
    %p172 = scmp.lt.s32.totalorder %s11, 3
    %p173 = pnand %p171, %p172
    %p174 = pneg %p173
    // Predicated region
    $region9: #{tpu_custom_call.1} parent=5 // pred_check
      _
    $region10: #{tpu_custom_call.1} parent=5 // pred_check_branch
      %176 = sbr.rel (%p173) target = $region12
    $region11: #{tpu_custom_call.1} parent=5 // pred_region
      %s177 = ssub.s32 %s11, 1
    $region12: #{tpu_custom_call.1} parent=5 // pred_fallthru
      _
    %p178 = scmp.lt.s32.totalorder %s11, 2
    // Predicated region
    $region13: #{tpu_custom_call.1} parent=5 // pred_check
      %p179 = pneg %p178
    $region14: #{tpu_custom_call.1} parent=5 // pred_check_branch
      %181 = sbr.rel (%p179) target = $region16
    $region15: #{tpu_custom_call.1} parent=5 // pred_region
      // Predicated region
      $region17: #{tpu_custom_call.1} parent=15 // pred_check
        %p182 = pneg %p49
      $region18: #{tpu_custom_call.1} parent=15 // pred_check_branch
        %184 = sbr.rel (%p182) target = $region20
      $region19: #{tpu_custom_call.1} parent=15 // pred_region
        %s185 = sadd.s32 %s18, %s19
        %p186 = scmp.lt.s32.totalorder %s185, 0
        %s187 = scalar_select %p186, %s185, 0
        %s188 = smul.u32 2, %s187
        %p189 = scmp.lt.s32.totalorder %s188, 1
        %s190 = scalar_select %p189, %s188, 1
        %s191 = smul.addr %s190, 4
        %s192 = smul.addr %s191, 8
        %s193 = scalar_lea.vmem %s0, %s192
        %s194 = sadd.s32 %s18, %s19
        %p195 = scmp.lt.s32.totalorder %s194, 0
        %s196 = scalar_select %p195, %s194, 0
        %s197 = smul.u32 2, %s196
      $region20: #{tpu_custom_call.1} parent=15 // pred_fallthru
        _
      // Predicated region
      $region21: #{tpu_custom_call.1} parent=15 // pred_check
        %p198 = pneg %p77
      $region22: #{tpu_custom_call.1} parent=15 // pred_check_branch
        %200 = sbr.rel (%p198) target = $region24
      $region23: #{tpu_custom_call.1} parent=15 // pred_region
        %s201 = sadd.s32 %s18, %s19
        %s202 = smul.u32 2, %s201
        %p203 = scmp.lt.s32.totalorder %s202, 3
        %s204 = scalar_select %p203, %s202, 3
        %s205 = smul.addr %s204, 8
        %s206 = scalar_lea.vmem %s1, %s205
        %s207 = sadd.s32 %s18, %s19
        %s208 = smul.u32 2, %s207
      $region24: #{tpu_custom_call.1} parent=15 // pred_fallthru
        _
      // Predicated region
      $region25: #{tpu_custom_call.1} parent=15 // pred_check
        %p209 = pneg %p105
      $region26: #{tpu_custom_call.1} parent=15 // pred_check_branch
        %211 = sbr.rel (%p209) target = $region28
      $region27: #{tpu_custom_call.1} parent=15 // pred_region
        %s212 = sadd.s32 %s18, %s19
        %s213 = smul.u32 2, %s212
        %p214 = scmp.lt.s32.totalorder %s213, 3
        %s215 = scalar_select %p214, %s213, 3
        %s216 = smul.addr %s215, 8
        %s217 = scalar_lea.vmem %s2, %s216
        %s218 = sadd.s32 %s18, %s19
        %s219 = smul.u32 2, %s218
      $region28: #{tpu_custom_call.1} parent=15 // pred_fallthru
        _
    $region16: #{tpu_custom_call.1} parent=5 // pred_fallthru
      _
    %p220 = scmp.le.s32.totalorder 1, %s11
    %p221 = scmp.lt.s32.totalorder %s11, 3
    %p222 = pnand %p220, %p221
    %p223 = pneg %p222
    // Predicated region
    $region29: #{tpu_custom_call.1} parent=5 // pred_check
      _
    $region30: #{tpu_custom_call.1} parent=5 // pred_check_branch
      %225 = sbr.rel (%p222) target = $region32
    $region31: #{tpu_custom_call.1} parent=5 // pred_region
      %s226 = ssub.s32 %s11, 1
      %s227 = sadd.s32 %s20, %s21
      %p228 = scmp.lt.s32.totalorder %s227, 0
      %s229 = scalar_select %p228, %s227, 0
      %s230 = smul.u32 2, %s229
      %p231 = scmp.lt.s32.totalorder %s230, 1
      %s232 = scalar_select %p231, %s230, 1
      %s233 = smul.addr %s232, 4
      %s234 = smul.addr %s233, 8
      %s235 = scalar_lea.vmem %s0, %s234
      %p236 = pneg %p55
      %p237 = pneg %p52
      %s238 = sadd.s32 %s20, %s21
      %s239 = smul.u32 2, %s238
      %p240 = scmp.lt.s32.totalorder %s239, 3
      %s241 = scalar_select %p240, %s239, 3
      %s242 = smul.addr %s241, 8
      %s243 = scalar_lea.vmem %s1, %s242
      %p244 = pneg %p83
      %p245 = pneg %p80
      %s246 = sadd.s32 %s20, %s21
      %s247 = smul.u32 2, %s246
      %p248 = scmp.lt.s32.totalorder %s247, 3
      %s249 = scalar_select %p248, %s247, 3
      %s250 = smul.addr %s249, 8
      %s251 = scalar_lea.vmem %s2, %s250
      %p252 = pneg %p111
      %p253 = pneg %p108
      %p254 = pneg %p137
      %p255 = pneg %p134
      %p256 = scmp.lt.s32.totalorder %s20, 1
      %s257 = scalar_select %p256, %s20, 1
      %s258 = scalar_lea.vmem %s3, %s257
      %p259 = pneg %p163
      %p260 = pneg %p160
      %p261 = scmp.lt.s32.totalorder %s20, 1
      %s262 = scalar_select %p261, %s20, 1
      %s263 = scalar_lea.vmem %s4, %s262
      %s264 = sadd.s32 %s20, %s21
      %p265 = scmp.lt.s32.totalorder %s264, 0
      %s266 = scalar_select %p265, %s264, 0
      %s267 = smul.u32 2, %s266
      %p268 = scmp.lt.s32.totalorder %s267, 1
      %s269 = scalar_select %p268, %s267, 1
      %s270 = smul.addr %s269, 4
      %s271 = smul.addr %s270, 8
      %s272 = scalar_lea.vmem %s0, %s271
      %s273 = sadd.s32 %s20, %s21
      %p274 = scmp.lt.s32.totalorder %s273, 0
      %s275 = scalar_select %p274, %s273, 0
      %s276 = smul.u32 2, %s275
      %s277 = sadd.s32 %s20, %s21
      %s278 = smul.u32 2, %s277
      %p279 = scmp.lt.s32.totalorder %s278, 3
      %s280 = scalar_select %p279, %s278, 3
      %s281 = smul.addr %s280, 8
      %s282 = scalar_lea.vmem %s1, %s281
      %s283 = sadd.s32 %s20, %s21
      %s284 = smul.u32 2, %s283
      %s285 = sadd.s32 %s20, %s21
      %s286 = smul.u32 2, %s285
      %p287 = scmp.lt.s32.totalorder %s286, 3
      %s288 = scalar_select %p287, %s286, 3
      %s289 = smul.addr %s288, 8
      %s290 = scalar_lea.vmem %s2, %s289
      %s291 = sadd.s32 %s20, %s21
      %s292 = smul.u32 2, %s291
      %p293 = scmp.lt.s32.totalorder %s20, 1
      %s294 = scalar_select %p293, %s20, 1
      %s295 = scalar_lea.vmem %s3, %s294
      %p296 = scmp.lt.s32.totalorder %s20, 1
      %s297 = scalar_select %p296, %s20, 1
      %s298 = scalar_lea.vmem %s4, %s297
      %p299 = scmp.eq.s32.totalorder %s21, 0
      // Predicated region
      $region33: #{tpu_custom_call.1} parent=31 // pred_check
        %p300 = pneg %p299
      $region34: #{tpu_custom_call.1} parent=31 // pred_check_branch
        %302 = sbr.rel (%p300) target = $region36
      $region35: #{tpu_custom_call.1} parent=31 // pred_region
        %vm303 = vcmask 7168
        %304 = vst.msk [vmem:[#allocation2] sm:$0xff] %vm303, 0.0
        %305 = vst.msk [vmem:[#allocation2 + $0x8] sm:$0xff] %vm303, 0.0
        %306 = vst.msk [vmem:[#allocation3] sm:$0xff] %vm303, 0.0
        %307 = vst.msk [vmem:[#allocation3 + $0x8] sm:$0xff] %vm303, 0.0
      $region36: #{tpu_custom_call.1} parent=31 // pred_fallthru
        _
      %v308 = vld [vmem:[%s272] sm:$0xff]
      %v309 = vld [vmem:[%s272 + $0x8] sm:$0xff]
      %v310 = vld [vmem:[%s272 + $0x10] sm:$0xff]
      %v311 = vld [vmem:[%s272 + $0x18] sm:$0xff]
      %v312 = vld [vmem:[%s272 + $0x20] sm:$0xff]
      %v313 = vld [vmem:[%s272 + $0x28] sm:$0xff]
      %v314 = vld [vmem:[%s272 + $0x30] sm:$0xff]
      %v315 = vld [vmem:[%s272 + $0x38] sm:$0xff]
      %v316 = vld [vmem:[%s282] sm:$0xff]
      %v317 = vld [vmem:[%s282 + $0x8] sm:$0xff]
      %v318 = vld [vmem:[%s290] sm:$0xff]
      %v319 = vld [vmem:[%s290 + $0x8] sm:$0xff]
      %v320 = vlaneseq
      %v321 = vand.u32 %v320, 127
      %v322 = vadd.s32 %v321, 128
      %v323 = vadd.s32 %v321, 256
      %v324 = vadd.s32 %v321, 384
      %325 = vset.pattern.permute.xlu0 0
      %326 = vperm.xlu0 %325, %v316
      %v327 = vpop.permute.xlu0 %326
      %328 = vset.pattern.permute.xlu0 0
      %329 = vperm.xlu0 %328, %v317
      %v330 = vpop.permute.xlu0 %329
      %vm331 = vcmp.eq.s32.totalorder %v321, %v327
      %vm332 = vcmp.eq.s32.totalorder %v322, %v327
      %vm333 = vcmp.eq.s32.totalorder %v323, %v327
      %vm334 = vcmp.eq.s32.totalorder %v324, %v327
      %vm335 = vcmp.eq.s32.totalorder %v321, %v330
      %vm336 = vcmp.eq.s32.totalorder %v322, %v330
      %vm337 = vcmp.eq.s32.totalorder %v323, %v330
      %vm338 = vcmp.eq.s32.totalorder %v324, %v330
      %v339 = vsel %vm331, %v308, 0.0
      %v340 = vsel %vm332, %v309, 0.0
      %v341 = vsel %vm333, %v310, 0.0
      %v342 = vsel %vm334, %v311, 0.0
      %v343 = vsel %vm335, %v312, 0.0
      %v344 = vsel %vm336, %v313, 0.0
      %v345 = vsel %vm337, %v314, 0.0
      %v346 = vsel %vm338, %v315, 0.0
      %v347 = vadd.f32 %v339, %v340
      %v348 = vadd.f32 %v347, %v341
      %v349 = vadd.f32 %v348, %v342
      %350 = vadd.xlane.f32.xlu0 %v349
      %v351 = vpop.xlane.xlu0 %350
      %v352 = vadd.f32 %v343, %v344
      %v353 = vadd.f32 %v352, %v345
      %v354 = vadd.f32 %v353, %v346
      %355 = vadd.xlane.f32.xlu0 %v354
      %v356 = vpop.xlane.xlu0 %355
      %v357 = vld [vmem:[#allocation2] sm:$0xff]
      %v358 = vld [vmem:[#allocation2 + $0x8] sm:$0xff]
      %vm359 = vcmp.ne.f32.partialorder %v318, 0.0
      %vm360 = vcmp.ne.f32.partialorder %v319, 0.0
      %v361 = vsub.f32 0.0, %v351
      %v362 = vsub.f32 0.0, %v356
      %v363 = vmul.f32 %v361, %v318
      %v364 = vmul.f32 %v362, %v319
      %v365 = vsel %vm359, %v363, 0.0
      %v366 = vsel %vm360, %v364, 0.0
      %v367 = vadd.f32 %v357, %v365
      %v368 = vadd.f32 %v358, %v366
      %vm369 = vcmask 7168
      %370 = vst.msk [vmem:[#allocation2] sm:$0xff] %vm369, %v367
      %371 = vst.msk [vmem:[#allocation2 + $0x8] sm:$0xff] %vm369, %v368
      %v372 = vld [vmem:[#allocation3] sm:$0xff]
      %v373 = vld [vmem:[#allocation3 + $0x8] sm:$0xff]
      %v374 = vadd.f32 %v372, %v318
      %v375 = vadd.f32 %v373, %v319
      %376 = vst.msk [vmem:[#allocation3] sm:$0xff] %vm369, %v374
      %377 = vst.msk [vmem:[#allocation3 + $0x8] sm:$0xff] %vm369, %v375
      // Predicated region
      $region37: #{tpu_custom_call.1} parent=31 // pred_check
        %p378 = pneg %p299
      $region38: #{tpu_custom_call.1} parent=31 // pred_check_branch
        %380 = sbr.rel (%p378) target = $region40
      $region39: #{tpu_custom_call.1} parent=31 // pred_region
        %v381 = vld [vmem:[#allocation2] sm:$0xff]
        %v382 = vld [vmem:[#allocation2 + $0x8] sm:$0xff]
        %v383 = vsel %vm369, %v381, 0.0
        %v384 = vsel %vm369, %v382, 0.0
        %v385 = vadd.f32 %v383, %v384
        %386 = vadd.xlane.f32.xlu0 %v385
        %v387 = vpop.xlane.xlu0 %386
        %v388 = vrot.slane %v387, 4
        %v389 = vadd.f32 %v387, %v388
        %v390 = vrot.slane %v389, 2
        %v391 = vadd.f32 %v389, %v390
        %v392 = vrot.slane %v391, 1
        %v393 = vadd.f32 %v391, %v392
        %s394 = vtos %v393
        %v395 = vstv %s394
        %vm396 = vcmask 0
        %397 = vst.msk [vmem:[%s295] sm:$0x1] %vm396, %v395
        %v398 = vld [vmem:[#allocation3] sm:$0xff]
        %v399 = vld [vmem:[#allocation3 + $0x8] sm:$0xff]
        %v400 = vsel %vm369, %v398, 0.0
        %v401 = vsel %vm369, %v399, 0.0
        %v402 = vadd.f32 %v400, %v401
        %403 = vadd.xlane.f32.xlu0 %v402
        %v404 = vpop.xlane.xlu0 %403
        %v405 = vrot.slane %v404, 4
        %v406 = vadd.f32 %v404, %v405
        %v407 = vrot.slane %v406, 2
        %v408 = vadd.f32 %v406, %v407
        %v409 = vrot.slane %v408, 1
        %v410 = vadd.f32 %v408, %v409
        %s411 = vtos %v410
        %v412 = vstv %s411
        %413 = vst.msk [vmem:[%s298] sm:$0x1] %vm396, %v412
      $region40: #{tpu_custom_call.1} parent=31 // pred_fallthru
        _
      %p414 = scmp.lt.s32.totalorder %s20, 1
      %s415 = scalar_select %p414, %s20, 1
      %s416 = scalar_lea.vmem %s3, %s415
      %p417 = scmp.lt.s32.totalorder %s20, 1
      %s418 = scalar_select %p417, %s20, 1
      %s419 = scalar_lea.vmem %s4, %s418
      // Predicated region
      $region41: #{tpu_custom_call.1} parent=31 // pred_check
        %p420 = pneg %p134
      $region42: #{tpu_custom_call.1} parent=31 // pred_check_branch
        %422 = sbr.rel (%p420) target = $region44
      $region43: #{tpu_custom_call.1} parent=31 // pred_region
        _
      $region44: #{tpu_custom_call.1} parent=31 // pred_fallthru
        _
      // Predicated region
      $region45: #{tpu_custom_call.1} parent=31 // pred_check
        %p423 = pneg %p160
      $region46: #{tpu_custom_call.1} parent=31 // pred_check_branch
        %425 = sbr.rel (%p423) target = $region48
      $region47: #{tpu_custom_call.1} parent=31 // pred_region
        _
      $region48: #{tpu_custom_call.1} parent=31 // pred_fallthru
        _
    $region32: #{tpu_custom_call.1} parent=5 // pred_fallthru
      _
    %p426 = scmp.le.s32.totalorder 2, %s11
    // Predicated region
    $region49: #{tpu_custom_call.1} parent=5 // pred_check
      %p427 = pneg %p426
    $region50: #{tpu_custom_call.1} parent=5 // pred_check_branch
      %429 = sbr.rel (%p427) target = $region52
    $region51: #{tpu_custom_call.1} parent=5 // pred_region
      %s430 = ssub.s32 %s11, 2
      // Predicated region
      $region53: #{tpu_custom_call.1} parent=51 // pred_check
        %p431 = pneg %p140
      $region54: #{tpu_custom_call.1} parent=51 // pred_check_branch
        %433 = sbr.rel (%p431) target = $region56
      $region55: #{tpu_custom_call.1} parent=51 // pred_region
        %p434 = scmp.lt.s32.totalorder %s22, 1
        %s435 = scalar_select %p434, %s22, 1
        %s436 = scalar_lea.vmem %s3, %s435
      $region56: #{tpu_custom_call.1} parent=51 // pred_fallthru
        _
      // Predicated region
      $region57: #{tpu_custom_call.1} parent=51 // pred_check
        %p437 = pneg %p166
      $region58: #{tpu_custom_call.1} parent=51 // pred_check_branch
        %439 = sbr.rel (%p437) target = $region60
      $region59: #{tpu_custom_call.1} parent=51 // pred_region
        %p440 = scmp.lt.s32.totalorder %s22, 1
        %s441 = scalar_select %p440, %s22, 1
        %s442 = scalar_lea.vmem %s4, %s441
      $region60: #{tpu_custom_call.1} parent=51 // pred_fallthru
        _
    $region52: #{tpu_custom_call.1} parent=5 // pred_fallthru
      _
  $region6: #{tpu_custom_call.1} parent=0 // loop_footer
    %s15 = sadd.s32 1, %s11
  $region7: #{tpu_custom_call.1} parent=0 // loop_footer_branch
    %10 = sbr.rel target = $region3
  $region8: #{tpu_custom_call.1} parent=0 // loop_exit
    _

</llo_original>
